<compile_context>
chip_gen: v7x
topology: tpu7x:2x2x1
jax: 0.10.0
libtpu: 0.0.40
codegen_flags: <defaults>
</compile_context>

<pallas_src>
import jax
import jax.numpy as jnp
from jax.experimental import pallas as pl
from jax.experimental.pallas import tpu as pltpu

# ----- module hyper-parameters (chosen so the residual add is shape-consistent:
#       2*padding == dilation*(kernel_size-1)) -----
KERNEL_SIZE = 2
STRIDE = 1
DILATION = 2
PADDING = 1
C_IN = 4
C_OUT = 8
SEQ_LEN = 16
BATCH = 2


def _make_kernel(NL, L, C_out):
    """Whole-block TemporalBlock kernel (all shape constants closed over)."""

    def kernel(xc_ref, wb_ref, bb_ref, w2_ref, b2_ref, o_ref):
        # Fused matmul #1 (one MXU push):
        #   columns [0:C_out)         -> conv1 pre-activation evaluated at time t-1
        #   columns [C_out:2*C_out)   -> conv1 pre-activation evaluated at time t+1
        #   columns [2*C_out:3*C_out) -> downsample residual  x[t] @ Wd + bd
        big = jnp.dot(xc_ref[...], wb_ref[...],
                      preferred_element_type=jnp.float32) + bb_ref[...]      # (NL, 3*C_out)

        ab = jnp.maximum(big[:, : 2 * C_out], 0.0)    # relu -> [out1[t-1] | out1[t+1]]
        res = big[:, 2 * C_out:]                      # residual (no relu yet)

        # conv2 sees a zero-padded out1: out1[-1] = out1[L] = 0.  Mask those taps (VPU only).
        t = jax.lax.broadcasted_iota(jnp.int32, (NL, 2 * C_out), 0) % L      # time index
        c = jax.lax.broadcasted_iota(jnp.int32, (NL, 2 * C_out), 1)          # column index
        keep = ((c < C_out) & (t != 0)) | ((c >= C_out) & (t != L - 1))
        ab = jnp.where(keep, ab, 0.0)

        # Fused matmul #2 (second MXU push): both conv2 taps at once, then relu
        # (dropout = identity in eval).
        out2 = jnp.maximum(
            jnp.dot(ab, w2_ref[...], preferred_element_type=jnp.float32) + b2_ref[...],
            0.0)                                                              # (NL, C_out)

        # Residual add + final relu, single dense store.
        o_ref[...] = jnp.maximum(out2 + res, 0.0)

    return kernel


def temporal_block(x_ncl, w1_pt, b1, w2_pt, b2, wd_pt, bd):
    """x_ncl: (N, C_in, L) float32 (PyTorch NCL layout).
       Weights in PyTorch Conv1d layout:
         w1_pt: (C_out, C_in, 2), w2_pt: (C_out, C_out, 2), wd_pt: (C_out, C_in, 1),
         biases b1/b2/bd: (C_out,)."""
    N, C_in, L = x_ncl.shape
    C_out = w1_pt.shape[0]
    NL = N * L

    # ---- im2col: one input slab with column groups [x[t-2], x[t], x[t+2]] (per batch) ----
    x_nlc = jnp.transpose(x_ncl, (0, 2, 1)).astype(jnp.float32)        # (N, L, C_in)
    z2 = jnp.zeros((N, 2, C_in), jnp.float32)
    x_m2 = jnp.concatenate([z2, x_nlc[:, : L - 2, :]], axis=1)         # x[t-2] (zeros at edge)
    x_p2 = jnp.concatenate([x_nlc[:, 2:, :], z2], axis=1)              # x[t+2] (zeros at edge)
    x_cols = jnp.concatenate([x_m2, x_nlc, x_p2], axis=2).reshape(NL, 3 * C_in)

    # ---- block-structured fused weights ----
    # conv1(x)[s] = W1_0 @ x[s-1] + W1_1 @ x[s+1] + b1   (k=2, dilation=2, padding=1)
    w1_0 = w1_pt[:, :, 0].T                    # (C_in, C_out)  conv1 tap 0
    w1_1 = w1_pt[:, :, 1].T                    # (C_in, C_out)  conv1 tap 1
    wd = wd_pt[:, :, 0].T                      # (C_in, C_out)  1x1 downsample
    Z = jnp.zeros((C_in, C_out), jnp.float32)
    # output column groups: [conv1@(t-1) | conv1@(t+1) | res]
    w_big = jnp.concatenate([
        jnp.concatenate([w1_0, Z,    Z], axis=1),    # rows multiplied by x[t-2]
        jnp.concatenate([w1_1, w1_0, wd], axis=1),   # rows multiplied by x[t]
        jnp.concatenate([Z,    w1_1, Z], axis=1),    # rows multiplied by x[t+2]
    ], axis=0).astype(jnp.float32)                   # (3*C_in, 3*C_out)
    b_big = jnp.concatenate([b1, b1, bd]).reshape(1, 3 * C_out).astype(jnp.float32)

    # conv2: out2[t] = W2_0 @ out1[t-1] + W2_1 @ out1[t+1] + b2  ->  stacked weight
    w2s = jnp.concatenate([w2_pt[:, :, 0].T, w2_pt[:, :, 1].T], axis=0).astype(jnp.float32)
    b2r = b2.reshape(1, C_out).astype(jnp.float32)

    vmem = pl.BlockSpec(memory_space=pltpu.MemorySpace.VMEM)
    out_flat = pl.pallas_call(
        _make_kernel(NL, L, C_out),
        out_shape=jax.ShapeDtypeStruct((NL, C_out), jnp.float32),
        in_specs=[vmem, vmem, vmem, vmem, vmem],
        out_specs=vmem,
    )(x_cols, w_big, b_big, w2s, b2r)

    return jnp.transpose(out_flat.reshape(N, L, C_out), (0, 2, 1))     # back to NCL


# ----------------- pure-JAX reference (PyTorch Conv1d semantics, NCL) -----------------
def _conv1d_ref(x, w, b, pad, dil):
    # x: (N, C_in, L), w: (C_out, C_in, K) — PyTorch layout
    y = jax.lax.conv_general_dilated(
        x, w, window_strides=(1,), padding=[(pad, pad)], rhs_dilation=(dil,),
        dimension_numbers=("NCH", "OIH", "NCH"))
    return y + b[None, :, None]


if __name__ == "__main__":
    key = jax.random.PRNGKey(0)
    ks = jax.random.split(key, 7)

    # Deterministic parameter init matching nn.Conv1d shapes; weights ~ N(0, 0.01) as in
    # init_weights(); biases small deterministic values.
    x = jax.random.normal(ks[0], (BATCH, C_IN, SEQ_LEN), jnp.float32)
    w1_pt = jax.random.normal(ks[1], (C_OUT, C_IN, KERNEL_SIZE), jnp.float32) * 0.01
    b1 = jax.random.normal(ks[2], (C_OUT,), jnp.float32) * 0.01
    w2_pt = jax.random.normal(ks[3], (C_OUT, C_OUT, KERNEL_SIZE), jnp.float32) * 0.01
    b2 = jax.random.normal(ks[4], (C_OUT,), jnp.float32) * 0.01
    wd_pt = jax.random.normal(ks[5], (C_OUT, C_IN, 1), jnp.float32) * 0.01
    bd = jax.random.normal(ks[6], (C_OUT,), jnp.float32) * 0.01

    y = jax.jit(temporal_block)(x, w1_pt, b1, w2_pt, b2, wd_pt, bd)
    jax.block_until_ready(y)

    # Cross-check against the lax.conv reference (dropout = identity in eval mode).
    out = jax.nn.relu(_conv1d_ref(x, w1_pt, b1, PADDING, DILATION))
    out = jax.nn.relu(_conv1d_ref(out, w2_pt, b2, PADDING, DILATION))
    res = _conv1d_ref(x, wd_pt, bd, 0, 1)
    y_ref = jax.nn.relu(out + res)

    assert y.shape == (BATCH, C_OUT, SEQ_LEN)
    assert jnp.allclose(y, y_ref, atol=1e-5, rtol=1e-5), "Pallas output != reference"

    print("KERNEL_OK")
</pallas_src>

<mosaic_0001>
module attributes {stable_mosaic.version = 11 : i64} {
  func.func @kernel(%arg0: memref<32x12xf32, #tpu.memory_space<vmem>>, %arg1: memref<12x24xf32, #tpu.memory_space<vmem>>, %arg2: memref<1x24xf32, #tpu.memory_space<vmem>>, %arg3: memref<16x8xf32, #tpu.memory_space<vmem>>, %arg4: memref<1x8xf32, #tpu.memory_space<vmem>>, %arg5: memref<32x8xf32, #tpu.memory_space<vmem>>) attributes {dimension_semantics = [], scalar_prefetch = 0 : i64, scratch_operands = 0 : i64, tpu.core_type = #tpu.core_type<tc>} {
    %c0 = arith.constant 0 : index
    %c0_0 = arith.constant 0 : index
    %0 = vector.load %arg0[%c0, %c0_0] : memref<32x12xf32, #tpu.memory_space<vmem>>, vector<32x12xf32>
    %c0_1 = arith.constant 0 : index
    %c0_2 = arith.constant 0 : index
    %1 = vector.load %arg1[%c0_1, %c0_2] : memref<12x24xf32, #tpu.memory_space<vmem>>, vector<12x24xf32>
    %cst = arith.constant dense<0.000000e+00> : vector<32x24xf32>
    %2 = tpu.matmul %0, %1, %cst {dimension_numbers = #tpu.dot_dimension_numbers<[1], [0], [0], [1], [0, 0, 1, 1], [], []>} : vector<32x12xf32>, vector<12x24xf32>, vector<32x24xf32> -> vector<32x24xf32>
    %c0_3 = arith.constant 0 : index
    %c0_4 = arith.constant 0 : index
    %3 = vector.load %arg2[%c0_3, %c0_4] : memref<1x24xf32, #tpu.memory_space<vmem>>, vector<1x24xf32>
    %4 = vector.broadcast %3 : vector<1x24xf32> to vector<32x24xf32>
    %5 = arith.addf %2, %4 : vector<32x24xf32>
    %6 = vector.extract_strided_slice %5 {offsets = [0, 0], sizes = [32, 16], strides = [1, 1]} : vector<32x24xf32> to vector<32x16xf32>
    %cst_5 = arith.constant 0.000000e+00 : f32
    %7 = vector.broadcast %cst_5 : f32 to vector<32x16xf32>
    %8 = arith.maximumf %6, %7 : vector<32x16xf32>
    %9 = vector.extract_strided_slice %5 {offsets = [0, 16], sizes = [32, 8], strides = [1, 1]} : vector<32x24xf32> to vector<32x8xf32>
    %10 = tpu.iota {dimensions = array<i32: 0>} : vector<32x16xi32>
    %c16_i32 = arith.constant 16 : i32
    %c0_i32 = arith.constant 0 : i32
    %11 = arith.cmpi eq, %c16_i32, %c0_i32 : i32
    %c1_i32 = arith.constant 1 : i32
    %12 = arith.select %11, %c1_i32, %c16_i32 : i32
    %13 = vector.broadcast %12 : i32 to vector<32x16xi32>
    %14 = arith.remsi %10, %13 : vector<32x16xi32>
    %c0_i32_6 = arith.constant 0 : i32
    %15 = vector.broadcast %c0_i32_6 : i32 to vector<32x16xi32>
    %16 = arith.cmpi ne, %14, %15 : vector<32x16xi32>
    %c0_i32_7 = arith.constant 0 : i32
    %17 = vector.broadcast %c0_i32_7 : i32 to vector<32x16xi32>
    %18 = arith.cmpi slt, %14, %17 : vector<32x16xi32>
    %c0_i32_8 = arith.constant 0 : i32
    %19 = arith.cmpi slt, %12, %c0_i32_8 : i32
    %20 = vector.broadcast %19 : i1 to vector<32x16xi1>
    %21 = vector.broadcast %20 : vector<32x16xi1> to vector<32x16xi1>
    %22 = arith.xori %18, %21 : vector<32x16xi1>
    %23 = arith.andi %22, %16 : vector<32x16xi1>
    %24 = vector.broadcast %12 : i32 to vector<32x16xi32>
    %25 = arith.addi %14, %24 : vector<32x16xi32>
    %26 = arith.select %23, %25, %14 : vector<32x16xi1>, vector<32x16xi32>
    %27 = tpu.iota {dimensions = array<i32: 1>} : vector<32x16xi32>
    %c8_i32 = arith.constant 8 : i32
    %28 = vector.broadcast %c8_i32 : i32 to vector<32x16xi32>
    %29 = arith.cmpi slt, %27, %28 : vector<32x16xi32>
    %c0_i32_9 = arith.constant 0 : i32
    %30 = vector.broadcast %c0_i32_9 : i32 to vector<32x16xi32>
    %31 = arith.cmpi ne, %26, %30 : vector<32x16xi32>
    %32 = arith.andi %29, %31 : vector<32x16xi1>
    %c8_i32_10 = arith.constant 8 : i32
    %33 = vector.broadcast %c8_i32_10 : i32 to vector<32x16xi32>
    %34 = arith.cmpi sge, %27, %33 : vector<32x16xi32>
    %c15_i32 = arith.constant 15 : i32
    %35 = vector.broadcast %c15_i32 : i32 to vector<32x16xi32>
    %36 = arith.cmpi ne, %26, %35 : vector<32x16xi32>
    %37 = arith.andi %34, %36 : vector<32x16xi1>
    %38 = arith.ori %32, %37 : vector<32x16xi1>
    %cst_11 = arith.constant 0.000000e+00 : f32
    %39 = vector.broadcast %cst_11 : f32 to vector<32x16xf32>
    %40 = arith.select %38, %8, %39 : vector<32x16xi1>, vector<32x16xf32>
    %c0_12 = arith.constant 0 : index
    %c0_13 = arith.constant 0 : index
    %41 = vector.load %arg3[%c0_12, %c0_13] : memref<16x8xf32, #tpu.memory_space<vmem>>, vector<16x8xf32>
    %cst_14 = arith.constant dense<0.000000e+00> : vector<32x8xf32>
    %42 = tpu.matmul %40, %41, %cst_14 {dimension_numbers = #tpu.dot_dimension_numbers<[1], [0], [0], [1], [0, 0, 1, 1], [], []>} : vector<32x16xf32>, vector<16x8xf32>, vector<32x8xf32> -> vector<32x8xf32>
    %c0_15 = arith.constant 0 : index
    %c0_16 = arith.constant 0 : index
    %43 = vector.load %arg4[%c0_15, %c0_16] : memref<1x8xf32, #tpu.memory_space<vmem>>, vector<1x8xf32>
    %44 = vector.broadcast %43 : vector<1x8xf32> to vector<32x8xf32>
    %45 = arith.addf %42, %44 : vector<32x8xf32>
    %cst_17 = arith.constant 0.000000e+00 : f32
    %46 = vector.broadcast %cst_17 : f32 to vector<32x8xf32>
    %47 = arith.maximumf %45, %46 : vector<32x8xf32>
    %48 = arith.addf %47, %9 : vector<32x8xf32>
    %cst_18 = arith.constant 0.000000e+00 : f32
    %49 = vector.broadcast %cst_18 : f32 to vector<32x8xf32>
    %50 = arith.maximumf %48, %49 : vector<32x8xf32>
    %c0_19 = arith.constant 0 : index
    %c0_20 = arith.constant 0 : index
    %51 = vector.load %arg5[%c0_19, %c0_20] : memref<32x8xf32, #tpu.memory_space<vmem>>, vector<32x8xf32>
    tpu.vector_store %arg5[%c0_19, %c0_20], %50 {strides = array<i32>} : memref<32x8xf32, #tpu.memory_space<vmem>>, vector<32x8xf32>,
    return
  }
}

</mosaic_0001>

<llo_original>
// kernel: temporal_block.1
$region0: #{temporal_block.1}
  #allocation0 [shape = 'u32[]', space=smem, size = 0x4, offset = 0x4, fixed_abs, tag = 'smem constant byte address 0x4 - core index']
  #allocation1 [shape = 'u32[144,128]{1,0:T(1,128)}', space=vmem, size = 0x12000, scoped, tag = 'internal scratch']
  %s0 = inlined_call_operand.vmem [shape: f32[32,12], index: 0, kind: input, shape index: {}]
  %s1 = inlined_call_operand.vmem [shape: f32[12,24], index: 1, kind: input, shape index: {}]
  %s2 = inlined_call_operand.vmem [shape: f32[1,24], index: 2, kind: input, shape index: {}]
  %s3 = inlined_call_operand.vmem [shape: f32[16,8], index: 3, kind: input, shape index: {}]
  %s4 = inlined_call_operand.vmem [shape: f32[1,8], index: 4, kind: input, shape index: {}]
  %s5 = inlined_call_operand.vmem [shape: f32[32,8], index: 5, kind: output, shape index: {}]
  %s6 = sld [smem:[#allocation0]]
  $region30: #{temporal_block.1} parent=0
    _
  %s8 = ssub.s32 1, %s6
  %s9 = scalar_select 0, %s8, %s6
  // Predicated region
  $region2: #{temporal_block.1} parent=0 // pred_check
    _
  $region3: #{temporal_block.1} parent=0 // pred_check_branch
    %11 = sbr.rel (0) target = $region5
  $region4: #{temporal_block.1} parent=0 // pred_region
    _
  $region5: #{temporal_block.1} parent=0 // pred_fallthru
    _
  // Predicated region
  $region6: #{temporal_block.1} parent=0 // pred_check
    _
  $region7: #{temporal_block.1} parent=0 // pred_check_branch
    %13 = sbr.rel (0) target = $region9
  $region8: #{temporal_block.1} parent=0 // pred_region
    _
  $region9: #{temporal_block.1} parent=0 // pred_fallthru
    _
  // Predicated region
  $region10: #{temporal_block.1} parent=0 // pred_check
    _
  $region11: #{temporal_block.1} parent=0 // pred_check_branch
    %15 = sbr.rel (0) target = $region13
  $region12: #{temporal_block.1} parent=0 // pred_region
    _
  $region13: #{temporal_block.1} parent=0 // pred_fallthru
    _
  // Predicated region
  $region14: #{temporal_block.1} parent=0 // pred_check
    _
  $region15: #{temporal_block.1} parent=0 // pred_check_branch
    %17 = sbr.rel (0) target = $region17
  $region16: #{temporal_block.1} parent=0 // pred_region
    _
  $region17: #{temporal_block.1} parent=0 // pred_fallthru
    _
  // Predicated region
  $region18: #{temporal_block.1} parent=0 // pred_check
    _
  $region19: #{temporal_block.1} parent=0 // pred_check_branch
    %19 = sbr.rel (0) target = $region21
  $region20: #{temporal_block.1} parent=0 // pred_region
    _
  $region21: #{temporal_block.1} parent=0 // pred_fallthru
    _
  %v20 = vld [vmem:[%s0] sm:$0xff]
  %v21 = vld [vmem:[%s0 + $0x8] sm:$0xff]
  %v22 = vld [vmem:[%s0 + $0x10] sm:$0xff]
  %v23 = vld [vmem:[%s0 + $0x18] sm:$0xff]
  %v24 = vld [vmem:[%s1] sm:$0xff]
  %v25 = vld [vmem:[%s1 + $0x8] sm:$0xf]
  %v26 = vld [vmem:[%s2] sm:$0x1]
  %v28 = vlaneseq
  %v29 = vshrl.u32 %v28, 7
  %v30 = vsub.s32 0, %v29
  %v31 = vrot.slane %v26, %v30
  %vm33 = vcmask 97280
  %v35 = vsel %vm33, %v20, 0
  %v38 = vsel %vm33, %v21, 0
  %v41 = vsel %vm33, %v22, 0
  %v44 = vsel %vm33, %v23, 0
  %vm46 = vcmask 1043456
  %v48 = vsel %vm46, %v25, 0
  %50 = vmatprep.subr.mxu0 0.0
  %51 = vmatpush1.msra.mxu0 %v24
  %52 = vmatprep.subr.mxu0 0.0
  %53 = vmatpush1.msra.mxu0 %v48
  %54 = vmatprep.subr.mxu0 0.0
  %55 = vmatpush1.msra.mxu0 0.0
  %56 = vmatprep.subr.mxu0 0.0
  %57 = vmatpush1.msra.mxu0 0.0
  %58 = vmatprep.subr.mxu0 0.0
  %59 = vmatpush1.msra.mxu0 0.0
  %60 = vmatprep.subr.mxu0 0.0
  %61 = vmatpush1.msra.mxu0 0.0
  %62 = vmatprep.subr.mxu0 0.0
  %63 = vmatpush1.msra.mxu0 0.0
  %64 = vmatprep.subr.mxu0 0.0
  %65 = vmatpush1.msra.mxu0 0.0
  %66 = vmatprep.subr.mxu0 0.0
  %67 = vmatpush1.msra.mxu0 0.0
  %68 = vmatprep.subr.mxu0 0.0
  %69 = vmatpush1.msra.mxu0 0.0
  %70 = vmatprep.subr.mxu0 0.0
  %71 = vmatpush1.msra.mxu0 0.0
  %72 = vmatprep.subr.mxu0 0.0
  %73 = vmatpush1.msra.mxu0 0.0
  %74 = vmatprep.subr.mxu0 0.0
  %75 = vmatpush1.msra.mxu0 0.0
  %76 = vmatprep.subr.mxu0 0.0
  %77 = vmatpush1.msra.mxu0 0.0
  %78 = vmatprep.subr.mxu0 0.0
  %79 = vmatpush1.msra.mxu0 0.0
  %80 = vmatprep.subr.mxu0 0.0
  %81 = vmatpush1.msra.mxu0 0.0
  %82 = vmatprep.subr.mxu0 0.0
  %83 = vmatpush1.msra.mxu0 0.0
  %84 = vmatprep.subr.mxu0 0.0
  %85 = vmatpush1.msra.mxu0 0.0
  %86 = vmatprep.subr.mxu0 0.0
  %87 = vmatpush1.msra.mxu0 0.0
  %88 = vmatprep.subr.mxu0 0.0
  %89 = vmatpush1.msra.mxu0 0.0
  %90 = vmatprep.subr.mxu0 0.0
  %91 = vmatpush1.msra.mxu0 0.0
  %92 = vmatprep.subr.mxu0 0.0
  %93 = vmatpush1.msra.mxu0 0.0
  %94 = vmatprep.subr.mxu0 0.0
  %95 = vmatpush1.msra.mxu0 0.0
  %96 = vmatprep.subr.mxu0 0.0
  %97 = vmatpush1.msra.mxu0 0.0
  %98 = vmatprep.subr.mxu0 0.0
  %99 = vmatpush1.msra.mxu0 0.0
  %100 = vmatprep.subr.mxu0 0.0
  %101 = vmatpush1.msra.mxu0 0.0
  %102 = vmatprep.subr.mxu0 0.0
  %103 = vmatpush1.msra.mxu0 0.0
  %104 = vmatprep.subr.mxu0 0.0
  %105 = vmatpush1.msra.mxu0 0.0
  %106 = vmatprep.subr.mxu0 0.0
  %107 = vmatpush1.msra.mxu0 0.0
  %108 = vmatprep.subr.mxu0 0.0
  %109 = vmatpush1.msra.mxu0 0.0
  %110 = vmatprep.subr.mxu0 0.0
  %111 = vmatpush1.msra.mxu0 0.0
  %112 = vmatprep.subr.mxu0 0.0
  %113 = vmatpush1.msra.mxu0 0.0
  %114 = vmatprep.mubr.f32.mxu0 0.0
  %115 = vmatmul.mubr.f32.gmra.mrb[0].mxu0 %v35
  %v116 = vpop.f32.mrb[0].mxu0
  %v117 = vadd.f32 %v31, %v116
  %v118 = vpop.f32.mrb[0].mxu0
  %119 = vmatprep.mubr.f32.mxu0 0.0
  %120 = vmatmul.mubr.f32.gmra.mrb[0].mxu0 %v38
  %v121 = vpop.f32.mrb[0].mxu0
  %v122 = vadd.f32 %v31, %v121
  %v123 = vpop.f32.mrb[0].mxu0
  %124 = vmatprep.mubr.f32.mxu0 0.0
  %125 = vmatmul.mubr.f32.gmra.mrb[0].mxu0 %v41
  %v126 = vpop.f32.mrb[0].mxu0
  %v127 = vadd.f32 %v31, %v126
  %v128 = vpop.f32.mrb[0].mxu0
  %129 = vmatprep.mubr.f32.mxu0 0.0
  %130 = vmatmul.mubr.f32.gmra.mrb[0].mxu0 %v44
  %v131 = vpop.f32.mrb[0].mxu0
  %v132 = vadd.f32 %v31, %v131
  %v133 = vpop.f32.mrb[0].mxu0
  %134 = vdwg.mxu0
  %v135 = vmax.f32 %v117, 0.0
  %v136 = vmax.f32 %v122, 0.0
  %v137 = vmax.f32 %v127, 0.0
  %v138 = vmax.f32 %v132, 0.0
  %v139 = vlaneseq
  %v140 = vshrl.u32 %v139, 7
  %v141 = vadd.s32 %v140, 8
  %v142 = vadd.s32 %v140, 16
  %v143 = vadd.s32 %v140, 24
  %vm144 = vcmp.lt.s32.totalorder %v140, 0
  %v145 = vsub.s32 0, %v140
  %v146 = vsel %vm144, %v145, %v140
  %v147 = vshrl.u32 %v146, 4
  %v148 = vand.u32 %v146, 15
  %v149 = vsub.s32 0, %v148
  %v150 = vsel %vm144, %v149, %v148
  %vm151 = vcmp.lt.s32.totalorder %v141, 0
  %v152 = vsub.s32 0, %v141
  %v153 = vsel %vm151, %v152, %v141
  %v154 = vshrl.u32 %v153, 4
  %v155 = vand.u32 %v153, 15
  %v156 = vsub.s32 0, %v155
  %v157 = vsel %vm151, %v156, %v155
  %vm158 = vcmp.lt.s32.totalorder %v142, 0
  %v159 = vsub.s32 0, %v142
  %v160 = vsel %vm158, %v159, %v142
  %v161 = vshrl.u32 %v160, 4
  %v162 = vand.u32 %v160, 15
  %v163 = vsub.s32 0, %v162
  %v164 = vsel %vm158, %v163, %v162
  %vm165 = vcmp.lt.s32.totalorder %v143, 0
  %v166 = vsub.s32 0, %v143
  %v167 = vsel %vm165, %v166, %v143
  %v168 = vshrl.u32 %v167, 4
  %v169 = vand.u32 %v167, 15
  %v170 = vsub.s32 0, %v169
  %v171 = vsel %vm165, %v170, %v169
  %vm172 = vcmp.ne.s32.totalorder %v150, 0
  %vm173 = vcmp.ne.s32.totalorder %v157, 0
  %vm174 = vcmp.ne.s32.totalorder %v164, 0
  %vm175 = vcmp.ne.s32.totalorder %v171, 0
  %vm176 = vcmp.lt.s32.totalorder %v150, 0
  %vm177 = vcmp.lt.s32.totalorder %v157, 0
  %vm178 = vcmp.lt.s32.totalorder %v164, 0
  %vm179 = vcmp.lt.s32.totalorder %v171, 0
  %vm180 = vmand %vm176, %vm172
  %vm181 = vmand %vm177, %vm173
  %vm182 = vmand %vm178, %vm174
  %vm183 = vmand %vm179, %vm175
  %v184 = vadd.s32 %v150, 16
  %v185 = vadd.s32 %v157, 16
  %v186 = vadd.s32 %v164, 16
  %v187 = vadd.s32 %v171, 16
  %v188 = vsel %vm180, %v184, %v150
  %v189 = vsel %vm181, %v185, %v157
  %v190 = vsel %vm182, %v186, %v164
  %v191 = vsel %vm183, %v187, %v171
  %v192 = vlaneseq
  %v193 = vand.u32 %v192, 127
  %vm194 = vcmp.lt.s32.totalorder %v193, 8
  %vm195 = vcmp.ne.s32.totalorder %v188, 0
  %vm196 = vcmp.ne.s32.totalorder %v189, 0
  %vm197 = vcmp.ne.s32.totalorder %v190, 0
  %vm198 = vcmp.ne.s32.totalorder %v191, 0
  %vm199 = vmand %vm194, %vm195
  %vm200 = vmand %vm194, %vm196
  %vm201 = vmand %vm194, %vm197
  %vm202 = vmand %vm194, %vm198
  %vm203 = vcmp.ge.s32.totalorder %v193, 8
  %vm204 = vcmp.ne.s32.totalorder %v188, 15
  %vm205 = vcmp.ne.s32.totalorder %v189, 15
  %vm206 = vcmp.ne.s32.totalorder %v190, 15
  %vm207 = vcmp.ne.s32.totalorder %v191, 15
  %vm208 = vmand %vm203, %vm204
  %vm209 = vmand %vm203, %vm205
  %vm210 = vmand %vm203, %vm206
  %vm211 = vmand %vm203, %vm207
  %vm212 = vmor %vm199, %vm208
  %vm213 = vmor %vm200, %vm209
  %vm214 = vmor %vm201, %vm210
  %vm215 = vmor %vm202, %vm211
  %v216 = vsel %vm212, %v135, 0.0
  %v217 = vsel %vm213, %v136, 0.0
  %v218 = vsel %vm214, %v137, 0.0
  %v219 = vsel %vm215, %v138, 0.0
  %v220 = vld [vmem:[%s3] sm:$0xff]
  %v221 = vld [vmem:[%s3 + $0x8] sm:$0xff]
  %v222 = vld [vmem:[%s4] sm:$0x1]
  %v224 = vlaneseq
  %v225 = vshrl.u32 %v224, 7
  %v226 = vsub.s32 0, %v225
  %v227 = vrot.slane %v222, %v226
  %vm229 = vcmask 130048
  %v231 = vsel %vm229, %v216, 0
  %v234 = vsel %vm229, %v217, 0
  %v237 = vsel %vm229, %v218, 0
  %v240 = vsel %vm229, %v219, 0
  %242 = vmatprep.subr.mxu0 0.0
  %243 = vmatpush1.msra.mxu0 %v220
  %244 = vmatprep.subr.mxu0 0.0
  %245 = vmatpush1.msra.mxu0 %v221
  %246 = vmatprep.subr.mxu0 0.0
  %247 = vmatpush1.msra.mxu0 0.0
  %248 = vmatprep.subr.mxu0 0.0
  %249 = vmatpush1.msra.mxu0 0.0
  %250 = vmatprep.subr.mxu0 0.0
  %251 = vmatpush1.msra.mxu0 0.0
  %252 = vmatprep.subr.mxu0 0.0
  %253 = vmatpush1.msra.mxu0 0.0
  %254 = vmatprep.subr.mxu0 0.0
  %255 = vmatpush1.msra.mxu0 0.0
  %256 = vmatprep.subr.mxu0 0.0
  %257 = vmatpush1.msra.mxu0 0.0
  %258 = vmatprep.subr.mxu0 0.0
  %259 = vmatpush1.msra.mxu0 0.0
  %260 = vmatprep.subr.mxu0 0.0
  %261 = vmatpush1.msra.mxu0 0.0
  %262 = vmatprep.subr.mxu0 0.0
  %263 = vmatpush1.msra.mxu0 0.0
  %264 = vmatprep.subr.mxu0 0.0
  %265 = vmatpush1.msra.mxu0 0.0
  %266 = vmatprep.subr.mxu0 0.0
  %267 = vmatpush1.msra.mxu0 0.0
  %268 = vmatprep.subr.mxu0 0.0
  %269 = vmatpush1.msra.mxu0 0.0
  %270 = vmatprep.subr.mxu0 0.0
  %271 = vmatpush1.msra.mxu0 0.0
  %272 = vmatprep.subr.mxu0 0.0
  %273 = vmatpush1.msra.mxu0 0.0
  %274 = vmatprep.subr.mxu0 0.0
  %275 = vmatpush1.msra.mxu0 0.0
  %276 = vmatprep.subr.mxu0 0.0
  %277 = vmatpush1.msra.mxu0 0.0
  %278 = vmatprep.subr.mxu0 0.0
  %279 = vmatpush1.msra.mxu0 0.0
  %280 = vmatprep.subr.mxu0 0.0
  %281 = vmatpush1.msra.mxu0 0.0
  %282 = vmatprep.subr.mxu0 0.0
  %283 = vmatpush1.msra.mxu0 0.0
  %284 = vmatprep.subr.mxu0 0.0
  %285 = vmatpush1.msra.mxu0 0.0
  %286 = vmatprep.subr.mxu0 0.0
  %287 = vmatpush1.msra.mxu0 0.0
  %288 = vmatprep.subr.mxu0 0.0
  %289 = vmatpush1.msra.mxu0 0.0
  %290 = vmatprep.subr.mxu0 0.0
  %291 = vmatpush1.msra.mxu0 0.0
  %292 = vmatprep.subr.mxu0 0.0
  %293 = vmatpush1.msra.mxu0 0.0
  %294 = vmatprep.subr.mxu0 0.0
  %295 = vmatpush1.msra.mxu0 0.0
  %296 = vmatprep.subr.mxu0 0.0
  %297 = vmatpush1.msra.mxu0 0.0
  %298 = vmatprep.subr.mxu0 0.0
  %299 = vmatpush1.msra.mxu0 0.0
  %300 = vmatprep.subr.mxu0 0.0
  %301 = vmatpush1.msra.mxu0 0.0
  %302 = vmatprep.subr.mxu0 0.0
  %303 = vmatpush1.msra.mxu0 0.0
  %304 = vmatprep.subr.mxu0 0.0
  %305 = vmatpush1.msra.mxu0 0.0
  %306 = vmatprep.mubr.f32.mxu0 0.0
  %307 = vmatmul.mubr.f32.gmra.mrb[0].mxu0 %v231
  %v308 = vpop.f32.mrb[0].mxu0
  %v309 = vadd.f32 %v227, %v308
  %v310 = vpop.f32.mrb[0].mxu0
  %311 = vmatprep.mubr.f32.mxu0 0.0
  %312 = vmatmul.mubr.f32.gmra.mrb[0].mxu0 %v234
  %v313 = vpop.f32.mrb[0].mxu0
  %v314 = vadd.f32 %v227, %v313
  %v315 = vpop.f32.mrb[0].mxu0
  %316 = vmatprep.mubr.f32.mxu0 0.0
  %317 = vmatmul.mubr.f32.gmra.mrb[0].mxu0 %v237
  %v318 = vpop.f32.mrb[0].mxu0
  %v319 = vadd.f32 %v227, %v318
  %v320 = vpop.f32.mrb[0].mxu0
  %321 = vmatprep.mubr.f32.mxu0 0.0
  %322 = vmatmul.mubr.f32.gmra.mrb[0].mxu0 %v240
  %v323 = vpop.f32.mrb[0].mxu0
  %v324 = vadd.f32 %v227, %v323
  %v325 = vpop.f32.mrb[0].mxu0
  %326 = vdwg.mxu0
  %v327 = vmax.f32 %v309, 0.0
  %v328 = vmax.f32 %v314, 0.0
  %v329 = vmax.f32 %v319, 0.0
  %v330 = vmax.f32 %v324, 0.0
  %335 = vrot.lane.b32.xlu0 %v117, 112
  %v336 = vpop.permute.xlu0 %335
  %337 = vrot.lane.b32.xlu0 %v122, 112
  %v338 = vpop.permute.xlu0 %337
  %339 = vrot.lane.b32.xlu0 %v127, 112
  %v340 = vpop.permute.xlu0 %339
  %341 = vrot.lane.b32.xlu0 %v132, 112
  %v342 = vpop.permute.xlu0 %341
  %v347 = vadd.f32 %v327, %v336
  %v348 = vadd.f32 %v328, %v338
  %v349 = vadd.f32 %v329, %v340
  %v350 = vadd.f32 %v330, %v342
  %v351 = vmax.f32 %v347, 0.0
  %v352 = vmax.f32 %v348, 0.0
  %v353 = vmax.f32 %v349, 0.0
  %v354 = vmax.f32 %v350, 0.0
  %vm355 = vcmask 64512
  %356 = vst.msk [vmem:[%s5] sm:$0xff] %vm355, %v351
  %357 = vst.msk [vmem:[%s5 + $0x8] sm:$0xff] %vm355, %v352
  %358 = vst.msk [vmem:[%s5 + $0x10] sm:$0xff] %vm355, %v353
  %359 = vst.msk [vmem:[%s5 + $0x18] sm:$0xff] %vm355, %v354
  // Predicated region
  $region22: #{temporal_block.1} parent=0 // pred_check
    _
  $region23: #{temporal_block.1} parent=0 // pred_check_branch
    %361 = sbr.rel (0) target = $region25
  $region24: #{temporal_block.1} parent=0 // pred_region
    _
  $region25: #{temporal_block.1} parent=0 // pred_fallthru
    _
  // Predicated region
  $region26: #{temporal_block.1} parent=0 // pred_check
    _
  $region27: #{temporal_block.1} parent=0 // pred_check_branch
    %363 = sbr.rel (0) target = $region29
  $region28: #{temporal_block.1} parent=0 // pred_region
    _
  $region29: #{temporal_block.1} parent=0 // pred_fallthru
    _

</llo_original>
